<compile_context>
chip_gen: v7x
topology: tpu7x:2x2x1
jax: 0.10.0
libtpu: 0.0.40
codegen_flags: <defaults>
</compile_context>

<pallas_src>
import jax
import jax.numpy as jnp
from jax.experimental import pallas as pl
from jax.experimental.pallas import tpu as pltpu


def _ffn_kernel(x_ref, w1_ref, w2_ref, w3_ref, o_ref, acc_ref):
    # x_ref: (tm, D); w1_ref/w2_ref: (D, th); w3_ref: (th, D);
    # o_ref: (tm, D); acc_ref: (tm, D) f32 scratch.
    j = pl.program_id(1)

    x = x_ref[...]
    # fc1 / fc2 projections for this H tile (f32 MXU accumulation).
    x1 = jnp.dot(x, w1_ref[...], preferred_element_type=jnp.float32)
    x2 = jnp.dot(x, w2_ref[...], preferred_element_type=jnp.float32)
    # SwiGLU gate in f32 (VPU; the sigmoid's exp/recip runs on the EUP).
    gated = (x1 * jax.nn.sigmoid(x1)) * x2

    # fc3 partial product for this H tile.
    partial = jnp.dot(
        gated.astype(w3_ref.dtype), w3_ref[...],
        preferred_element_type=jnp.float32,
    )

    @pl.when(j == 0)
    def _():                      # first H step: plain write (no init + RMW)
        acc_ref[...] = partial

    @pl.when(j > 0)
    def _():
        acc_ref[...] += partial

    @pl.when(j == pl.num_programs(1) - 1)
    def _():
        o_ref[...] = acc_ref[...].astype(o_ref.dtype)


def _choose_tile(dim, target, align):
    """Largest multiple of `align` <= target that evenly divides `dim`.
    Dims <= target are used whole (full-extent block)."""
    if dim <= target:
        return dim
    t = (target // align) * align
    while t >= align:
        if dim % t == 0:
            return t
        t -= align
    # TODO(synk): no lane/sublane-aligned divisor; fall back to the largest
    # plain divisor <= target instead of padding / a masked cdiv last tile.
    t = target
    while t > 1 and dim % t:
        t -= 1
    return max(t, 1)


def _vmem_bytes(tm, th, D, op_bytes, out_bytes):
    # Double-buffered tiles (x, w1, w2, w3, out) + the f32 accumulator.
    return (2 * tm * D * op_bytes          # x
            + 2 * 2 * D * th * op_bytes    # w1 + w2
            + 2 * th * D * op_bytes        # w3
            + 2 * tm * D * out_bytes       # out
            + tm * D * 4)                  # f32 accumulator


def feed_forward(x, w1, w2, w3, *, tm=512, th=512):
    """x: [T, D]; w1, w2: [D, H]; w3: [H, D] -> [T, D]."""
    T, D = x.shape
    H = w1.shape[1]

    op_bytes = jnp.dtype(x.dtype).itemsize
    m_align = max(8, 32 // op_bytes)        # sublane packing: 8 f32 / 16 bf16

    # VMEM budget: ~80% of per-core physical VMEM (headroom for Mosaic scratch)
    # -> ~102 MiB on v5e/v6e (128 MiB), ~51 MiB on v7x (64 MiB).
    try:
        phys_vmem = pltpu.get_tpu_info().vmem_capacity_bytes
    except Exception:
        phys_vmem = 64 * 1024 * 1024
    budget = int(phys_vmem * 0.8)

    tm = _choose_tile(T, tm, m_align)       # large token tile: ~tm FLOP/weight-byte
    th = _choose_tile(H, th, 128)           # lane-aligned H reduction tile

    # v7x has 2 TensorCores: give the "parallel" token axis >= 2 iterations
    # when T is big enough to split cleanly.
    if tm == T and T >= 256 and (T // 2) % m_align == 0:
        tm = T // 2

    # Shrink tiles until the double-buffered working set fits the VMEM budget.
    for _ in range(16):
        if _vmem_bytes(tm, th, D, op_bytes, op_bytes) <= budget:
            break
        if th >= 256:
            th //= 2            # even divisor of H stays a divisor when halved
        elif tm >= 2 * m_align:
            tm //= 2
        else:
            break

    grid = (T // tm, H // th)

    return pl.pallas_call(
        _ffn_kernel,
        out_shape=jax.ShapeDtypeStruct((T, D), x.dtype),
        grid=grid,
        in_specs=[
            pl.BlockSpec((tm, D), lambda i, j: (i, 0)),   # x row tile
            pl.BlockSpec((D, th), lambda i, j: (0, j)),   # w1 tile
            pl.BlockSpec((D, th), lambda i, j: (0, j)),   # w2 tile
            pl.BlockSpec((th, D), lambda i, j: (j, 0)),   # w3 tile
        ],
        out_specs=pl.BlockSpec((tm, D), lambda i, j: (i, 0)),
        scratch_shapes=[pltpu.VMEM((tm, D), jnp.float32)],
        compiler_params=pltpu.CompilerParams(
            dimension_semantics=("parallel", "arbitrary"),
            vmem_limit_bytes=budget,
        ),
    )(x, w1, w2, w3)


def feed_forward_ref(x, w1, w2, w3):
    x1 = x @ w1
    x2 = x @ w2
    return ((x1 * jax.nn.sigmoid(x1)) * x2) @ w3


if __name__ == "__main__":
    # Small, LLaMA-like config: batch=2, seq=8, emb_dim=32, hidden_dim=64, f32.
    batch, seq, emb_dim, hidden_dim = 2, 8, 32, 64
    dtype = jnp.float32

    key = jax.random.PRNGKey(0)
    kx, k1, k2, k3 = jax.random.split(key, 4)

    x = jax.random.normal(kx, (batch, seq, emb_dim), dtype=dtype)
    # Deterministic "nn.Linear"-style weights (stored as [in, out]).
    w1 = (jax.random.normal(k1, (emb_dim, hidden_dim), dtype=dtype)
          / jnp.sqrt(emb_dim))
    w2 = (jax.random.normal(k2, (emb_dim, hidden_dim), dtype=dtype)
          / jnp.sqrt(emb_dim))
    w3 = (jax.random.normal(k3, (hidden_dim, emb_dim), dtype=dtype)
          / jnp.sqrt(hidden_dim))

    x2d = x.reshape(batch * seq, emb_dim)
    ref = feed_forward_ref(x2d, w1, w2, w3)

    # f32 path (matches the PyTorch module's default dtype semantics).
    out2d = feed_forward(x2d, w1, w2, w3)
    out = out2d.reshape(batch, seq, emb_dim)
    jax.block_until_ready(out)
    assert out.shape == (batch, seq, emb_dim)
    assert jnp.allclose(out2d, ref, atol=1e-4, rtol=1e-4)

    # bf16 operand path (halves the dominant weight HBM stream; f32
    # accumulation + f32 gate inside the kernel).
    out_bf16 = feed_forward(
        x2d.astype(jnp.bfloat16),
        w1.astype(jnp.bfloat16),
        w2.astype(jnp.bfloat16),
        w3.astype(jnp.bfloat16),
    )
    jax.block_until_ready(out_bf16)
    assert jnp.allclose(out_bf16.astype(jnp.float32), ref, atol=1e-1, rtol=1e-1)

    print("KERNEL_OK")
</pallas_src>

<mosaic_0001>
module attributes {stable_mosaic.version = 11 : i64} {
  func.func @_ffn_kernel(%arg0: i32, %arg1: i32, %arg2: memref<16x32xf32, #tpu.memory_space<vmem>>, %arg3: memref<32x64xf32, #tpu.memory_space<vmem>>, %arg4: memref<32x64xf32, #tpu.memory_space<vmem>>, %arg5: memref<64x32xf32, #tpu.memory_space<vmem>>, %arg6: memref<16x32xf32, #tpu.memory_space<vmem>>, %arg7: memref<16x32xf32, #tpu.memory_space<vmem>>) attributes {dimension_semantics = [#tpu.dimension_semantics<parallel>, #tpu.dimension_semantics<arbitrary>], iteration_bounds = array<i64: 1, 1>, scalar_prefetch = 0 : i64, scratch_operands = 1 : i64, tpu.core_type = #tpu.core_type<tc>, window_params = [{transform_indices = @transform_0, window_bounds = array<i64: 16, 32>}, {transform_indices = @transform_1, window_bounds = array<i64: 32, 64>}, {transform_indices = @transform_2, window_bounds = array<i64: 32, 64>}, {transform_indices = @transform_3, window_bounds = array<i64: 64, 32>}, {transform_indices = @transform_4, window_bounds = array<i64: 16, 32>}]} {
    %c0 = arith.constant 0 : index
    %c0_0 = arith.constant 0 : index
    %0 = vector.load %arg2[%c0, %c0_0] : memref<16x32xf32, #tpu.memory_space<vmem>>, vector<16x32xf32>
    %c0_1 = arith.constant 0 : index
    %c0_2 = arith.constant 0 : index
    %1 = vector.load %arg3[%c0_1, %c0_2] : memref<32x64xf32, #tpu.memory_space<vmem>>, vector<32x64xf32>
    %cst = arith.constant dense<0.000000e+00> : vector<16x64xf32>
    %2 = tpu.matmul %0, %1, %cst {dimension_numbers = #tpu.dot_dimension_numbers<[1], [0], [0], [1], [0, 0, 1, 1], [], []>} : vector<16x32xf32>, vector<32x64xf32>, vector<16x64xf32> -> vector<16x64xf32>
    %c0_3 = arith.constant 0 : index
    %c0_4 = arith.constant 0 : index
    %3 = vector.load %arg4[%c0_3, %c0_4] : memref<32x64xf32, #tpu.memory_space<vmem>>, vector<32x64xf32>
    %cst_5 = arith.constant dense<0.000000e+00> : vector<16x64xf32>
    %4 = tpu.matmul %0, %3, %cst_5 {dimension_numbers = #tpu.dot_dimension_numbers<[1], [0], [0], [1], [0, 0, 1, 1], [], []>} : vector<16x32xf32>, vector<32x64xf32>, vector<16x64xf32> -> vector<16x64xf32>
    %5 = arith.negf %2 : vector<16x64xf32>
    %6 = math.exp %5 : vector<16x64xf32>
    %cst_6 = arith.constant 1.000000e+00 : f32
    %7 = vector.broadcast %cst_6 : f32 to vector<16x64xf32>
    %8 = arith.addf %7, %6 : vector<16x64xf32>
    %9 = arith.divf %7, %8 : vector<16x64xf32>
    %10 = arith.mulf %2, %9 : vector<16x64xf32>
    %11 = arith.mulf %10, %4 : vector<16x64xf32>
    %c0_7 = arith.constant 0 : index
    %c0_8 = arith.constant 0 : index
    %12 = vector.load %arg5[%c0_7, %c0_8] : memref<64x32xf32, #tpu.memory_space<vmem>>, vector<64x32xf32>
    %cst_9 = arith.constant dense<0.000000e+00> : vector<16x32xf32>
    %13 = tpu.matmul %11, %12, %cst_9 {dimension_numbers = #tpu.dot_dimension_numbers<[1], [0], [0], [1], [0, 0, 1, 1], [], []>} : vector<16x64xf32>, vector<64x32xf32>, vector<16x32xf32> -> vector<16x32xf32>
    %c0_i32 = arith.constant 0 : i32
    %14 = arith.cmpi eq, %arg1, %c0_i32 : i32
    %15 = arith.extui %14 : i1 to i32
    %c0_i32_10 = arith.constant 0 : i32
    %16 = arith.cmpi ne, %15, %c0_i32_10 : i32
    scf.if %16 {
      %c0_15 = arith.constant 0 : index
      %c0_16 = arith.constant 0 : index
      %23 = vector.load %arg7[%c0_15, %c0_16] : memref<16x32xf32, #tpu.memory_space<vmem>>, vector<16x32xf32>
      tpu.vector_store %arg7[%c0_15, %c0_16], %13 {strides = array<i32>} : memref<16x32xf32, #tpu.memory_space<vmem>>, vector<16x32xf32>,
    } else {
    }
    %c0_i32_11 = arith.constant 0 : i32
    %17 = arith.cmpi sgt, %arg1, %c0_i32_11 : i32
    %18 = arith.extui %17 : i1 to i32
    %c0_i32_12 = arith.constant 0 : i32
    %19 = arith.cmpi ne, %18, %c0_i32_12 : i32
    scf.if %19 {
      %c0_15 = arith.constant 0 : index
      %c0_16 = arith.constant 0 : index
      %23 = vector.load %arg7[%c0_15, %c0_16] : memref<16x32xf32, #tpu.memory_space<vmem>>, vector<16x32xf32>
      %24 = arith.addf %23, %13 : vector<16x32xf32>
      %c0_17 = arith.constant 0 : index
      %c0_18 = arith.constant 0 : index
      %25 = vector.load %arg7[%c0_17, %c0_18] : memref<16x32xf32, #tpu.memory_space<vmem>>, vector<16x32xf32>
      tpu.vector_store %arg7[%c0_17, %c0_18], %24 {strides = array<i32>} : memref<16x32xf32, #tpu.memory_space<vmem>>, vector<16x32xf32>,
    } else {
    }
    %c0_i32_13 = arith.constant 0 : i32
    %20 = arith.cmpi eq, %arg1, %c0_i32_13 : i32
    %21 = arith.extui %20 : i1 to i32
    %c0_i32_14 = arith.constant 0 : i32
    %22 = arith.cmpi ne, %21, %c0_i32_14 : i32
    scf.if %22 {
      %c0_15 = arith.constant 0 : index
      %c0_16 = arith.constant 0 : index
      %23 = vector.load %arg7[%c0_15, %c0_16] : memref<16x32xf32, #tpu.memory_space<vmem>>, vector<16x32xf32>
      %c0_17 = arith.constant 0 : index
      %c0_18 = arith.constant 0 : index
      %24 = vector.load %arg6[%c0_17, %c0_18] : memref<16x32xf32, #tpu.memory_space<vmem>>, vector<16x32xf32>
      tpu.vector_store %arg6[%c0_17, %c0_18], %23 {strides = array<i32>} : memref<16x32xf32, #tpu.memory_space<vmem>>, vector<16x32xf32>,
    } else {
    }
    return
  }
  func.func @transform_0(%arg0: i32, %arg1: i32) -> (i32, i32) {
    %c0_i32 = arith.constant 0 : i32
    %c0_i32_0 = arith.constant 0 : i32
    return %arg0, %c0_i32 : i32, i32
  }
  func.func @transform_1(%arg0: i32, %arg1: i32) -> (i32, i32) {
    %c0_i32 = arith.constant 0 : i32
    %c0_i32_0 = arith.constant 0 : i32
    return %c0_i32, %arg1 : i32, i32
  }
  func.func @transform_2(%arg0: i32, %arg1: i32) -> (i32, i32) {
    %c0_i32 = arith.constant 0 : i32
    %c0_i32_0 = arith.constant 0 : i32
    return %c0_i32, %arg1 : i32, i32
  }
  func.func @transform_3(%arg0: i32, %arg1: i32) -> (i32, i32) {
    %c0_i32 = arith.constant 0 : i32
    %c0_i32_0 = arith.constant 0 : i32
    return %arg1, %c0_i32 : i32, i32
  }
  func.func @transform_4(%arg0: i32, %arg1: i32) -> (i32, i32) {
    %c0_i32 = arith.constant 0 : i32
    %c0_i32_0 = arith.constant 0 : i32
    return %arg0, %c0_i32 : i32, i32
  }
}

</mosaic_0001>

<llo_original>
// kernel: tpu_custom_call.1
$region0: #{tpu_custom_call.1}
  #allocation0 [shape = 'u32[]', space=smem, size = 0x4, offset = 0x4, fixed_abs, tag = 'smem constant byte address 0x4 - core index']
  #allocation1 [shape = 'u32[144,128]{1,0:T(1,128)}', space=vmem, size = 0x12000, scoped, tag = 'internal scratch']
  #allocation2 [shape = 'f32[16,32]{1,0:T(8,128)}', space=vmem, size = 0x2000, scoped, tag = 'scratch operand']
  %s0 = inlined_call_operand.vmem [shape: f32[16,32], index: 0, kind: input, shape index: {}]
  %s1 = inlined_call_operand.vmem [shape: f32[32,64], index: 1, kind: input, shape index: {}]
  %s2 = inlined_call_operand.vmem [shape: f32[32,64], index: 2, kind: input, shape index: {}]
  %s3 = inlined_call_operand.vmem [shape: f32[64,32], index: 3, kind: input, shape index: {}]
  %s4 = inlined_call_operand.hbm [shape: f32[16,32], index: 4, kind: output, shape index: {}]
  %s5 = sld [smem:[#allocation0]]
  $region38: #{tpu_custom_call.1} parent=0
    _
  %s7 = ssub.s32 1, %s5
  %s8 = scalar_select 0, %s7, %s5
  $region1: #{tpu_custom_call.1} parent=0
    #allocation3 [shape = 'u8[8192]{0}', space=vmem, size = 0x2000, scoped, tag = 'output window, operand 0, single buffered']
    #allocation4 [shape = 's32[1]{0}', space=sflag, size = 0x4, scoped, tag = 'scoped memory for tpu_custom_call.1']
    %9 = vsyncpa [#allocation4], 0
    // Predicated region
    $region2: #{tpu_custom_call.1} parent=1 // pred_check
      _
    $region3: #{tpu_custom_call.1} parent=1 // pred_check_branch
      %11 = sbr.rel (0) target = $region5
    $region4: #{tpu_custom_call.1} parent=1 // pred_region
      _
    $region5: #{tpu_custom_call.1} parent=1 // pred_fallthru
      _
    // Predicated region
    $region6: #{tpu_custom_call.1} parent=1 // pred_check
      _
    $region7: #{tpu_custom_call.1} parent=1 // pred_check_branch
      %13 = sbr.rel (0) target = $region9
    $region8: #{tpu_custom_call.1} parent=1 // pred_region
      _
    $region9: #{tpu_custom_call.1} parent=1 // pred_fallthru
      _
    // Predicated region
    $region10: #{tpu_custom_call.1} parent=1 // pred_check
      _
    $region11: #{tpu_custom_call.1} parent=1 // pred_check_branch
      %15 = sbr.rel (0) target = $region13
    $region12: #{tpu_custom_call.1} parent=1 // pred_region
      _
    $region13: #{tpu_custom_call.1} parent=1 // pred_fallthru
      _
    // Predicated region
    $region14: #{tpu_custom_call.1} parent=1 // pred_check
      _
    $region15: #{tpu_custom_call.1} parent=1 // pred_check_branch
      %17 = sbr.rel (0) target = $region17
    $region16: #{tpu_custom_call.1} parent=1 // pred_region
      _
    $region17: #{tpu_custom_call.1} parent=1 // pred_fallthru
      _
    %v18 = vld [vmem:[%s0] sm:$0xff]
    %v19 = vld [vmem:[%s0 + $0x8] sm:$0xff]
    %v20 = vld [vmem:[%s1] sm:$0xff]
    %v21 = vld [vmem:[%s1 + $0x8] sm:$0xff]
    %v22 = vld [vmem:[%s1 + $0x10] sm:$0xff]
    %v23 = vld [vmem:[%s1 + $0x18] sm:$0xff]
    %vm24 = vcmask 261120
    %v26 = vsel %vm24, %v18, 0
    %v29 = vsel %vm24, %v19, 0
    %31 = vmatprep.subr.mxu0 0.0
    %32 = vmatpush1.msra.mxu0 %v20
    %33 = vmatprep.subr.mxu0 0.0
    %34 = vmatpush1.msra.mxu0 %v21
    %35 = vmatprep.subr.mxu0 0.0
    %36 = vmatpush1.msra.mxu0 %v22
    %37 = vmatprep.subr.mxu0 0.0
    %38 = vmatpush1.msra.mxu0 %v23
    %39 = vmatprep.subr.mxu0 0.0
    %40 = vmatpush1.msra.mxu0 0.0
    %41 = vmatprep.subr.mxu0 0.0
    %42 = vmatpush1.msra.mxu0 0.0
    %43 = vmatprep.subr.mxu0 0.0
    %44 = vmatpush1.msra.mxu0 0.0
    %45 = vmatprep.subr.mxu0 0.0
    %46 = vmatpush1.msra.mxu0 0.0
    %47 = vmatprep.subr.mxu0 0.0
    %48 = vmatpush1.msra.mxu0 0.0
    %49 = vmatprep.subr.mxu0 0.0
    %50 = vmatpush1.msra.mxu0 0.0
    %51 = vmatprep.subr.mxu0 0.0
    %52 = vmatpush1.msra.mxu0 0.0
    %53 = vmatprep.subr.mxu0 0.0
    %54 = vmatpush1.msra.mxu0 0.0
    %55 = vmatprep.subr.mxu0 0.0
    %56 = vmatpush1.msra.mxu0 0.0
    %57 = vmatprep.subr.mxu0 0.0
    %58 = vmatpush1.msra.mxu0 0.0
    %59 = vmatprep.subr.mxu0 0.0
    %60 = vmatpush1.msra.mxu0 0.0
    %61 = vmatprep.subr.mxu0 0.0
    %62 = vmatpush1.msra.mxu0 0.0
    %63 = vmatprep.subr.mxu0 0.0
    %64 = vmatpush1.msra.mxu0 0.0
    %65 = vmatprep.subr.mxu0 0.0
    %66 = vmatpush1.msra.mxu0 0.0
    %67 = vmatprep.subr.mxu0 0.0
    %68 = vmatpush1.msra.mxu0 0.0
    %69 = vmatprep.subr.mxu0 0.0
    %70 = vmatpush1.msra.mxu0 0.0
    %71 = vmatprep.subr.mxu0 0.0
    %72 = vmatpush1.msra.mxu0 0.0
    %73 = vmatprep.subr.mxu0 0.0
    %74 = vmatpush1.msra.mxu0 0.0
    %75 = vmatprep.subr.mxu0 0.0
    %76 = vmatpush1.msra.mxu0 0.0
    %77 = vmatprep.subr.mxu0 0.0
    %78 = vmatpush1.msra.mxu0 0.0
    %79 = vmatprep.subr.mxu0 0.0
    %80 = vmatpush1.msra.mxu0 0.0
    %81 = vmatprep.subr.mxu0 0.0
    %82 = vmatpush1.msra.mxu0 0.0
    %83 = vmatprep.subr.mxu0 0.0
    %84 = vmatpush1.msra.mxu0 0.0
    %85 = vmatprep.subr.mxu0 0.0
    %86 = vmatpush1.msra.mxu0 0.0
    %87 = vmatprep.subr.mxu0 0.0
    %88 = vmatpush1.msra.mxu0 0.0
    %89 = vmatprep.subr.mxu0 0.0
    %90 = vmatpush1.msra.mxu0 0.0
    %91 = vmatprep.subr.mxu0 0.0
    %92 = vmatpush1.msra.mxu0 0.0
    %93 = vmatprep.subr.mxu0 0.0
    %94 = vmatpush1.msra.mxu0 0.0
    %95 = vmatprep.mubr.f32.mxu0 0.0
    %96 = vmatmul.mubr.f32.gmra.mrb[0].mxu0 %v26
    %v97 = vpop.f32.mrb[0].mxu0
    %v98 = vadd.f32 0.0, %v97
    %v99 = vpop.f32.mrb[0].mxu0
    %100 = vmatprep.mubr.f32.mxu0 0.0
    %101 = vmatmul.mubr.f32.gmra.mrb[0].mxu0 %v29
    %v102 = vpop.f32.mrb[0].mxu0
    %v103 = vadd.f32 0.0, %v102
    %v104 = vpop.f32.mrb[0].mxu0
    %105 = vdwg.mxu0
    %v106 = vld [vmem:[%s2] sm:$0xff]
    %v107 = vld [vmem:[%s2 + $0x8] sm:$0xff]
    %v108 = vld [vmem:[%s2 + $0x10] sm:$0xff]
    %v109 = vld [vmem:[%s2 + $0x18] sm:$0xff]
    %110 = vmatprep.subr.mxu0 0.0
    %111 = vmatpush1.msra.mxu0 %v106
    %112 = vmatprep.subr.mxu0 0.0
    %113 = vmatpush1.msra.mxu0 %v107
    %114 = vmatprep.subr.mxu0 0.0
    %115 = vmatpush1.msra.mxu0 %v108
    %116 = vmatprep.subr.mxu0 0.0
    %117 = vmatpush1.msra.mxu0 %v109
    %118 = vmatprep.subr.mxu0 0.0
    %119 = vmatpush1.msra.mxu0 0.0
    %120 = vmatprep.subr.mxu0 0.0
    %121 = vmatpush1.msra.mxu0 0.0
    %122 = vmatprep.subr.mxu0 0.0
    %123 = vmatpush1.msra.mxu0 0.0
    %124 = vmatprep.subr.mxu0 0.0
    %125 = vmatpush1.msra.mxu0 0.0
    %126 = vmatprep.subr.mxu0 0.0
    %127 = vmatpush1.msra.mxu0 0.0
    %128 = vmatprep.subr.mxu0 0.0
    %129 = vmatpush1.msra.mxu0 0.0
    %130 = vmatprep.subr.mxu0 0.0
    %131 = vmatpush1.msra.mxu0 0.0
    %132 = vmatprep.subr.mxu0 0.0
    %133 = vmatpush1.msra.mxu0 0.0
    %134 = vmatprep.subr.mxu0 0.0
    %135 = vmatpush1.msra.mxu0 0.0
    %136 = vmatprep.subr.mxu0 0.0
    %137 = vmatpush1.msra.mxu0 0.0
    %138 = vmatprep.subr.mxu0 0.0
    %139 = vmatpush1.msra.mxu0 0.0
    %140 = vmatprep.subr.mxu0 0.0
    %141 = vmatpush1.msra.mxu0 0.0
    %142 = vmatprep.subr.mxu0 0.0
    %143 = vmatpush1.msra.mxu0 0.0
    %144 = vmatprep.subr.mxu0 0.0
    %145 = vmatpush1.msra.mxu0 0.0
    %146 = vmatprep.subr.mxu0 0.0
    %147 = vmatpush1.msra.mxu0 0.0
    %148 = vmatprep.subr.mxu0 0.0
    %149 = vmatpush1.msra.mxu0 0.0
    %150 = vmatprep.subr.mxu0 0.0
    %151 = vmatpush1.msra.mxu0 0.0
    %152 = vmatprep.subr.mxu0 0.0
    %153 = vmatpush1.msra.mxu0 0.0
    %154 = vmatprep.subr.mxu0 0.0
    %155 = vmatpush1.msra.mxu0 0.0
    %156 = vmatprep.subr.mxu0 0.0
    %157 = vmatpush1.msra.mxu0 0.0
    %158 = vmatprep.subr.mxu0 0.0
    %159 = vmatpush1.msra.mxu0 0.0
    %160 = vmatprep.subr.mxu0 0.0
    %161 = vmatpush1.msra.mxu0 0.0
    %162 = vmatprep.subr.mxu0 0.0
    %163 = vmatpush1.msra.mxu0 0.0
    %164 = vmatprep.subr.mxu0 0.0
    %165 = vmatpush1.msra.mxu0 0.0
    %166 = vmatprep.subr.mxu0 0.0
    %167 = vmatpush1.msra.mxu0 0.0
    %168 = vmatprep.subr.mxu0 0.0
    %169 = vmatpush1.msra.mxu0 0.0
    %170 = vmatprep.subr.mxu0 0.0
    %171 = vmatpush1.msra.mxu0 0.0
    %172 = vmatprep.subr.mxu0 0.0
    %173 = vmatpush1.msra.mxu0 0.0
    %174 = vmatprep.mubr.f32.mxu0 0.0
    %175 = vmatmul.mubr.f32.gmra.mrb[0].mxu0 %v26
    %v176 = vpop.f32.mrb[0].mxu0
    %v177 = vadd.f32 0.0, %v176
    %v178 = vpop.f32.mrb[0].mxu0
    %179 = vmatprep.mubr.f32.mxu0 0.0
    %180 = vmatmul.mubr.f32.gmra.mrb[0].mxu0 %v29
    %v181 = vpop.f32.mrb[0].mxu0
    %v182 = vadd.f32 0.0, %v181
    %v183 = vpop.f32.mrb[0].mxu0
    %184 = vdwg.mxu0
    %v185 = vxor.u32 %v98, 2147483648
    %v186 = vxor.u32 %v103, 2147483648
    %v187 = vmul.f32 %v185, 1.442695
    %v188 = vpow.pop %v187
    %v189 = vmul.f32 %v186, 1.442695
    %v190 = vpow.pop %v189
    %v191 = vadd.f32 %v188, 1.0
    %v192 = vadd.f32 %v190, 1.0
    %v193 = vrcp.pop %v191
    %v194 = vmul.f32 1.0, %v193
    %v195 = vrcp.pop %v192
    %v196 = vmul.f32 1.0, %v195
    %v197 = vmul.f32 %v98, %v194
    %v198 = vmul.f32 %v103, %v196
    %v199 = vmul.f32 %v197, %v177
    %v200 = vmul.f32 %v198, %v182
    %v201 = vld [vmem:[%s3] sm:$0xff]
    %v202 = vld [vmem:[%s3 + $0x8] sm:$0xff]
    %v203 = vld [vmem:[%s3 + $0x10] sm:$0xff]
    %v204 = vld [vmem:[%s3 + $0x18] sm:$0xff]
    %v205 = vld [vmem:[%s3 + $0x20] sm:$0xff]
    %v206 = vld [vmem:[%s3 + $0x28] sm:$0xff]
    %v207 = vld [vmem:[%s3 + $0x30] sm:$0xff]
    %v208 = vld [vmem:[%s3 + $0x38] sm:$0xff]
    %vm209 = vcmask 523264
    %v211 = vsel %vm209, %v199, 0
    %v214 = vsel %vm209, %v200, 0
    %216 = vmatprep.subr.mxu0 0.0
    %217 = vmatpush1.msra.mxu0 %v201
    %218 = vmatprep.subr.mxu0 0.0
    %219 = vmatpush1.msra.mxu0 %v202
    %220 = vmatprep.subr.mxu0 0.0
    %221 = vmatpush1.msra.mxu0 %v203
    %222 = vmatprep.subr.mxu0 0.0
    %223 = vmatpush1.msra.mxu0 %v204
    %224 = vmatprep.subr.mxu0 0.0
    %225 = vmatpush1.msra.mxu0 %v205
    %226 = vmatprep.subr.mxu0 0.0
    %227 = vmatpush1.msra.mxu0 %v206
    %228 = vmatprep.subr.mxu0 0.0
    %229 = vmatpush1.msra.mxu0 %v207
    %230 = vmatprep.subr.mxu0 0.0
    %231 = vmatpush1.msra.mxu0 %v208
    %232 = vmatprep.subr.mxu0 0.0
    %233 = vmatpush1.msra.mxu0 0.0
    %234 = vmatprep.subr.mxu0 0.0
    %235 = vmatpush1.msra.mxu0 0.0
    %236 = vmatprep.subr.mxu0 0.0
    %237 = vmatpush1.msra.mxu0 0.0
    %238 = vmatprep.subr.mxu0 0.0
    %239 = vmatpush1.msra.mxu0 0.0
    %240 = vmatprep.subr.mxu0 0.0
    %241 = vmatpush1.msra.mxu0 0.0
    %242 = vmatprep.subr.mxu0 0.0
    %243 = vmatpush1.msra.mxu0 0.0
    %244 = vmatprep.subr.mxu0 0.0
    %245 = vmatpush1.msra.mxu0 0.0
    %246 = vmatprep.subr.mxu0 0.0
    %247 = vmatpush1.msra.mxu0 0.0
    %248 = vmatprep.subr.mxu0 0.0
    %249 = vmatpush1.msra.mxu0 0.0
    %250 = vmatprep.subr.mxu0 0.0
    %251 = vmatpush1.msra.mxu0 0.0
    %252 = vmatprep.subr.mxu0 0.0
    %253 = vmatpush1.msra.mxu0 0.0
    %254 = vmatprep.subr.mxu0 0.0
    %255 = vmatpush1.msra.mxu0 0.0
    %256 = vmatprep.subr.mxu0 0.0
    %257 = vmatpush1.msra.mxu0 0.0
    %258 = vmatprep.subr.mxu0 0.0
    %259 = vmatpush1.msra.mxu0 0.0
    %260 = vmatprep.subr.mxu0 0.0
    %261 = vmatpush1.msra.mxu0 0.0
    %262 = vmatprep.subr.mxu0 0.0
    %263 = vmatpush1.msra.mxu0 0.0
    %264 = vmatprep.subr.mxu0 0.0
    %265 = vmatpush1.msra.mxu0 0.0
    %266 = vmatprep.subr.mxu0 0.0
    %267 = vmatpush1.msra.mxu0 0.0
    %268 = vmatprep.subr.mxu0 0.0
    %269 = vmatpush1.msra.mxu0 0.0
    %270 = vmatprep.subr.mxu0 0.0
    %271 = vmatpush1.msra.mxu0 0.0
    %272 = vmatprep.subr.mxu0 0.0
    %273 = vmatpush1.msra.mxu0 0.0
    %274 = vmatprep.subr.mxu0 0.0
    %275 = vmatpush1.msra.mxu0 0.0
    %276 = vmatprep.subr.mxu0 0.0
    %277 = vmatpush1.msra.mxu0 0.0
    %278 = vmatprep.subr.mxu0 0.0
    %279 = vmatpush1.msra.mxu0 0.0
    %280 = vmatprep.mubr.f32.mxu0 0.0
    %281 = vmatmul.mubr.f32.gmra.mrb[0].mxu0 %v211
    %v282 = vpop.f32.mrb[0].mxu0
    %v283 = vadd.f32 0.0, %v282
    %v284 = vpop.f32.mrb[0].mxu0
    %285 = vmatprep.mubr.f32.mxu0 0.0
    %286 = vmatmul.mubr.f32.gmra.mrb[0].mxu0 %v214
    %v287 = vpop.f32.mrb[0].mxu0
    %v288 = vadd.f32 0.0, %v287
    %v289 = vpop.f32.mrb[0].mxu0
    %290 = vdwg.mxu0
    %p291 = scmp.eq.s32.totalorder 0, 0
    // Predicated region
    $region18: #{tpu_custom_call.1} parent=1 // pred_check
      %p292 = pneg %p291
    $region19: #{tpu_custom_call.1} parent=1 // pred_check_branch
      %294 = sbr.rel (%p292) target = $region21
    $region20: #{tpu_custom_call.1} parent=1 // pred_region
      %295 = vst.msk [vmem:[#allocation2] sm:$0xff] %vm24, %v283
      %296 = vst.msk [vmem:[#allocation2 + $0x8] sm:$0xff] %vm24, %v288
    $region21: #{tpu_custom_call.1} parent=1 // pred_fallthru
      _
    %p297 = scmp.gt.s32.totalorder 0, 0
    // Predicated region
    $region22: #{tpu_custom_call.1} parent=1 // pred_check
      %p298 = pneg %p297
    $region23: #{tpu_custom_call.1} parent=1 // pred_check_branch
      %300 = sbr.rel (%p298) target = $region25
    $region24: #{tpu_custom_call.1} parent=1 // pred_region
      %v301 = vld [vmem:[#allocation2] sm:$0xff]
      %v302 = vld [vmem:[#allocation2 + $0x8] sm:$0xff]
      %v303 = vadd.f32 %v301, %v283
      %v304 = vadd.f32 %v302, %v288
      %305 = vst.msk [vmem:[#allocation2] sm:$0xff] %vm24, %v303
      %306 = vst.msk [vmem:[#allocation2 + $0x8] sm:$0xff] %vm24, %v304
    $region25: #{tpu_custom_call.1} parent=1 // pred_fallthru
      _
    // Predicated region
    $region26: #{tpu_custom_call.1} parent=1 // pred_check
      %p307 = pneg %p291
    $region27: #{tpu_custom_call.1} parent=1 // pred_check_branch
      %309 = sbr.rel (%p307) target = $region29
    $region28: #{tpu_custom_call.1} parent=1 // pred_region
      %v310 = vld [vmem:[#allocation2] sm:$0xff]
      %v311 = vld [vmem:[#allocation2 + $0x8] sm:$0xff]
      %312 = vst.msk [vmem:[#allocation3] sm:$0xff] %vm24, %v310
      %313 = vst.msk [vmem:[#allocation3 + $0x8] sm:$0xff] %vm24, %v311
    $region29: #{tpu_custom_call.1} parent=1 // pred_fallthru
      _
    // Predicated region
    $region30: #{tpu_custom_call.1} parent=1 // pred_check
      _
    $region31: #{tpu_custom_call.1} parent=1 // pred_check_branch
      %315 = sbr.rel (0) target = $region33
    $region32: #{tpu_custom_call.1} parent=1 // pred_region
      %s317 = ssub.s32 256, 256
      %318 = vsyncadd [#allocation4], %s317
      %s319 = sshll.u32 [#allocation3], 4
      %s320 = int_to_ptr.vmem [resolvable:$true] %s319
      %325 = dma.vmem_to_hbm [thread:$0]  %s320, 256, %s4, [#allocation4], 128, 128, 8
    $region33: #{tpu_custom_call.1} parent=1 // pred_fallthru
      _
    // Predicated region
    $region34: #{tpu_custom_call.1} parent=1 // pred_check
      _
    $region35: #{tpu_custom_call.1} parent=1 // pred_check_branch
      %327 = sbr.rel (0) target = $region37
    $region36: #{tpu_custom_call.1} parent=1 // pred_region
      %328 = dma.done [#allocation4], 256
    $region37: #{tpu_custom_call.1} parent=1 // pred_fallthru
      _
    %329 = vsyncpa [#allocation4], 1

</llo_original>
